<compile_context>
chip_gen: v7x
topology: tpu7x:2x2x1
jax: 0.10.0
libtpu: 0.0.40
codegen_flags: <defaults>
</compile_context>

<pallas_src>
import jax
import jax.numpy as jnp
from jax.experimental import pallas as pl
from jax.experimental.pallas import tpu as pltpu


def _drop_path_kernel(scale_ref, x_ref, o_ref):
    """scale_ref: (TB, 1) f32; x_ref/o_ref: (TB, TM) in the input dtype."""
    x = x_ref[...].astype(jnp.float32)
    o_ref[...] = (x * scale_ref[...]).astype(o_ref.dtype)


def _vmem_budgets():
    """(tile_target_bytes, vmem_limit_bytes), generation-aware and v7x-safe."""
    try:
        cap = int(pltpu.get_tpu_info().vmem_capacity_bytes)
    except Exception:
        cap = 64 * 1024 * 1024  # conservative: assume smallest (v7x-class) VMEM
    if cap >= 128 * 1024 * 1024:           # v5e / v6e: plenty of headroom
        return 12 * 1024 * 1024, 64 * 1024 * 1024
    return 8 * 1024 * 1024, 48 * 1024 * 1024   # v7x / unknown


def _choose_tiles(B, M, itemsize, target_bytes):
    """Pick (tb, tm) block shape: lane-dense, sublane-aligned, VMEM-bounded."""
    # Packed-sublane granularity: f32 -> 8, bf16/f16 -> 16, int8/fp8 -> 32.
    sub = max(8, 32 // max(1, itemsize))
    row_bytes = max(1, M * itemsize)
    max_rows = target_bytes // row_bytes
    if max_rows >= B:
        return B, M                                  # single tile
    if max_rows >= sub:
        return (max_rows // sub) * sub, M            # full rows, sublane-aligned
    # Even a sublane group of full rows is over budget: tile the feature axis.
    tb = B if B < sub else sub                       # ==B (full dim) or multiple of 8
    lane_budget = max(1, target_bytes // max(1, tb * itemsize))
    tm = max(128, (lane_budget // 128) * 128)        # multiple of 128 lanes
    return tb, min(tm, M)


def drop_path(x, *, drop_prob: float = 0.0, training: bool = False,
              key=None, seed: int = 0, donate_input: bool = False,
              target_bytes=None):
    """DropPath forward. x: (B, ...). Returns array of same shape/dtype."""
    if drop_prob == 0.0 or not training:
        return x
    if key is None:
        key = jax.random.PRNGKey(seed)
    keep_prob = 1.0 - float(drop_prob)

    B = x.shape[0]
    M = 1
    for d in x.shape[1:]:
        M *= d
    x_flat = x.reshape(B, M)

    # Per-sample scale in f32: 0 (dropped) or 1/keep_prob.
    # floor(keep_prob + u) == 1  <=>  u >= drop_prob  (prob = keep_prob).
    u = jax.random.uniform(key, (B,), dtype=jnp.float32)
    keep = (u >= jnp.float32(drop_prob)).astype(jnp.float32)
    scale = (keep / jnp.float32(keep_prob)).reshape(B, 1)

    auto_target, vmem_limit = _vmem_budgets()
    if target_bytes is None:
        target_bytes = auto_target
    tb, tm = _choose_tiles(B, M, x.dtype.itemsize, int(target_bytes))
    grid = (pl.cdiv(B, tb), pl.cdiv(M, tm))

    out_flat = pl.pallas_call(
        _drop_path_kernel,
        out_shape=jax.ShapeDtypeStruct((B, M), x.dtype),
        grid_spec=pl.GridSpec(
            grid=grid,
            in_specs=[
                pl.BlockSpec((tb, 1), lambda i, j: (i, 0)),    # per-sample scale
                pl.BlockSpec((tb, tm), lambda i, j: (i, j)),   # activations
            ],
            out_specs=pl.BlockSpec((tb, tm), lambda i, j: (i, j)),
        ),
        compiler_params=pltpu.CompilerParams(
            dimension_semantics=("parallel", "parallel"),
            vmem_limit_bytes=vmem_limit,
        ),
        input_output_aliases={1: 0} if donate_input else {},
    )(scale, x_flat)
    return out_flat.reshape(x.shape)


class DropPath:
    """Mirror of the PyTorch module (no parameters)."""

    def __init__(self, drop_prob=None):
        self.drop_prob = 0.0 if drop_prob is None else float(drop_prob)
        self.training = True

    def __call__(self, x, *, key=None, seed: int = 0, donate_input: bool = False):
        return drop_path(x, drop_prob=self.drop_prob, training=self.training,
                         key=key, seed=seed, donate_input=donate_input)


if __name__ == "__main__":
    key = jax.random.PRNGKey(0)
    kx, kx2, kd, kd2 = jax.random.split(key, 4)

    drop_prob = 0.25
    keep_prob = 1.0 - drop_prob
    mod = DropPath(drop_prob)

    def check(y, x):
        # Each sample must be either exactly dropped (all zeros) or x / keep_prob.
        for b in range(x.shape[0]):
            dropped = float(jnp.max(jnp.abs(y[b]))) == 0.0
            scaled = bool(jnp.allclose(y[b].astype(jnp.float32),
                                       x[b].astype(jnp.float32) / keep_prob,
                                       rtol=1e-5, atol=1e-6))
            assert dropped or scaled, f"sample {b}: not a valid drop-path output"

    # Small primary case (single-tile grid).
    B, N, D = 2, 8, 32
    x = jax.random.normal(kx, (B, N, D), dtype=jnp.float32)
    mod.training = True
    y = jax.block_until_ready(mod(x, key=kd))
    assert y.shape == x.shape and y.dtype == x.dtype
    check(y, x)

    # Ragged multi-block grid: tiny byte budget forces row tiling (cdiv over
    # B=13 with tb=8) AND feature tiling (tm=128 over M=384).
    B2, N2, D2 = 13, 8, 48
    x2 = jax.random.normal(kx2, (B2, N2, D2), dtype=jnp.float32)
    y2 = jax.block_until_ready(
        drop_path(x2, drop_prob=drop_prob, training=True, key=kd2,
                  target_bytes=4096))
    assert y2.shape == x2.shape and y2.dtype == x2.dtype
    check(y2, x2)

    # eval path is identity (no kernel launch)
    mod.training = False
    y_eval = jax.block_until_ready(mod(x))
    assert bool(jnp.array_equal(y_eval, x))

    print("KERNEL_OK")
</pallas_src>

<mosaic_0001>
module attributes {stable_mosaic.version = 11 : i64} {
  func.func @_drop_path_kernel(%arg0: i32, %arg1: i32, %arg2: memref<2x1xf32, #tpu.memory_space<vmem>>, %arg3: memref<2x256xf32, #tpu.memory_space<vmem>>, %arg4: memref<2x256xf32, #tpu.memory_space<vmem>>) attributes {dimension_semantics = [#tpu.dimension_semantics<parallel>, #tpu.dimension_semantics<parallel>], iteration_bounds = array<i64: 1, 1>, scalar_prefetch = 0 : i64, scratch_operands = 0 : i64, tpu.core_type = #tpu.core_type<tc>, window_params = [{transform_indices = @transform_0, window_bounds = array<i64: 2, 1>}, {transform_indices = @transform_1, window_bounds = array<i64: 2, 256>}, {transform_indices = @transform_2, window_bounds = array<i64: 2, 256>}]} {
    %c0 = arith.constant 0 : index
    %c0_0 = arith.constant 0 : index
    %0 = vector.load %arg3[%c0, %c0_0] : memref<2x256xf32, #tpu.memory_space<vmem>>, vector<2x256xf32>
    %c0_1 = arith.constant 0 : index
    %c0_2 = arith.constant 0 : index
    %1 = vector.load %arg2[%c0_1, %c0_2] : memref<2x1xf32, #tpu.memory_space<vmem>>, vector<2x1xf32>
    %2 = vector.broadcast %1 : vector<2x1xf32> to vector<2x256xf32>
    %3 = arith.mulf %0, %2 : vector<2x256xf32>
    %c0_3 = arith.constant 0 : index
    %c0_4 = arith.constant 0 : index
    %4 = vector.load %arg4[%c0_3, %c0_4] : memref<2x256xf32, #tpu.memory_space<vmem>>, vector<2x256xf32>
    tpu.vector_store %arg4[%c0_3, %c0_4], %3 {strides = array<i32>} : memref<2x256xf32, #tpu.memory_space<vmem>>, vector<2x256xf32>,
    return
  }
  func.func @transform_0(%arg0: i32, %arg1: i32) -> (i32, i32) {
    %c0_i32 = arith.constant 0 : i32
    %c0_i32_0 = arith.constant 0 : i32
    return %arg0, %c0_i32 : i32, i32
  }
  func.func @transform_1(%arg0: i32, %arg1: i32) -> (i32, i32) {
    %c0_i32 = arith.constant 0 : i32
    return %arg0, %arg1 : i32, i32
  }
  func.func @transform_2(%arg0: i32, %arg1: i32) -> (i32, i32) {
    %c0_i32 = arith.constant 0 : i32
    return %arg0, %arg1 : i32, i32
  }
}

</mosaic_0001>

<llo_original>
// kernel: tpu_custom_call.1
$region0: #{tpu_custom_call.1}
  #allocation0 [shape = 'u32[]', space=smem, size = 0x4, offset = 0x4, fixed_abs, tag = 'smem constant byte address 0x4 - core index']
  #allocation1 [shape = 'u32[144,128]{1,0:T(1,128)}', space=vmem, size = 0x12000, scoped, tag = 'internal scratch']
  %s0 = inlined_call_operand.vmem [shape: f32[2,1], index: 0, kind: input, shape index: {}]
  %s1 = inlined_call_operand.vmem [shape: f32[2,256], index: 1, kind: input, shape index: {}]
  %s2 = inlined_call_operand.hbm [shape: f32[2,256], index: 2, kind: output, shape index: {}]
  %s3 = sld [smem:[#allocation0]]
  $region18: #{tpu_custom_call.1} parent=0
    _
  %s5 = ssub.s32 1, %s3
  %s6 = scalar_select 0, %s5, %s3
  $region1: #{tpu_custom_call.1} parent=0
    #allocation2 [shape = 'u8[2048]{0}', space=vmem, size = 0x800, scoped, tag = 'output window, operand 0, single buffered']
    #allocation3 [shape = 's32[1]{0}', space=sflag, size = 0x4, scoped, tag = 'scoped memory for tpu_custom_call.1']
    %7 = vsyncpa [#allocation3], 0
    // Predicated region
    $region2: #{tpu_custom_call.1} parent=1 // pred_check
      _
    $region3: #{tpu_custom_call.1} parent=1 // pred_check_branch
      %9 = sbr.rel (0) target = $region5
    $region4: #{tpu_custom_call.1} parent=1 // pred_region
      _
    $region5: #{tpu_custom_call.1} parent=1 // pred_fallthru
      _
    // Predicated region
    $region6: #{tpu_custom_call.1} parent=1 // pred_check
      _
    $region7: #{tpu_custom_call.1} parent=1 // pred_check_branch
      %11 = sbr.rel (0) target = $region9
    $region8: #{tpu_custom_call.1} parent=1 // pred_region
      _
    $region9: #{tpu_custom_call.1} parent=1 // pred_fallthru
      _
    %v12 = vld [vmem:[%s1] sm:$0xf]
    %v13 = vld [vmem:[%s0] sm:$0x3]
    %15 = vset.pattern.permute.xlu0 0
    %16 = vperm.xlu0 %15, %v13
    %v17 = vpop.permute.xlu0 %16
    %v19 = vunpack.c.l.s4 269488144
    %v20 = vunpack.c.0.s8 %v19
    %v21 = vlaneseq
    %v22 = vshrl.u32 %v21, 7
    %v23 = vsub.s32 %v20, %v22
    %v24 = vrot.slane %v17, %v23
    %v26 = vmul.f32 %v12, %v24
    %27 = vst [vmem:[#allocation2] sm:$0xf] %v26
    // Predicated region
    $region10: #{tpu_custom_call.1} parent=1 // pred_check
      _
    $region11: #{tpu_custom_call.1} parent=1 // pred_check_branch
      %29 = sbr.rel (0) target = $region13
    $region12: #{tpu_custom_call.1} parent=1 // pred_region
      %s31 = ssub.s32 64, 64
      %32 = vsyncadd [#allocation3], %s31
      %s34 = sshll.u32 [#allocation2], 4
      %s35 = int_to_ptr.vmem [resolvable:$true] %s34
      %37 = dma.vmem_to_hbm [thread:$0]  %s35, 64, %s2, [#allocation3]
    $region13: #{tpu_custom_call.1} parent=1 // pred_fallthru
      _
    // Predicated region
    $region14: #{tpu_custom_call.1} parent=1 // pred_check
      _
    $region15: #{tpu_custom_call.1} parent=1 // pred_check_branch
      %39 = sbr.rel (0) target = $region17
    $region16: #{tpu_custom_call.1} parent=1 // pred_region
      %40 = dma.done [#allocation3], 64
    $region17: #{tpu_custom_call.1} parent=1 // pred_fallthru
      _
    %41 = vsyncpa [#allocation3], 1

</llo_original>
